<compile_context>
chip_gen: v7x
topology: tpu7x:2x2x1
jax: 0.10.0
libtpu: 0.0.40
codegen_flags: <defaults>
</compile_context>

<pallas_src>
import functools

import jax
import jax.numpy as jnp
from jax.experimental import pallas as pl
from jax.experimental.pallas import tpu as pltpu


def _round_up(x, m):
    return ((x + m - 1) // m) * m


def _edge_embedding_kernel(feat_ref, table_ref, out_ref, *, num_type, num_stereo):
    """One row-tile of edges.

    feat_ref  : [TE, 4] f32   (type, stereo, aromatic, conjugated)
    table_ref : [K_pad, OUT_pad] f32  block-diagonal fused table (resident)
    out_ref   : [TE, OUT_pad] f32
    """
    te = feat_ref.shape[0]
    k_pad = table_ref.shape[0]

    feats = feat_ref[...]                                # [TE, 4]
    t_idx = feats[:, 0:1].astype(jnp.int32)              # [TE, 1]
    s_idx = feats[:, 1:2].astype(jnp.int32)              # [TE, 1]
    arom = feats[:, 2:3]                                 # [TE, 1] f32
    conj = feats[:, 3:4]                                 # [TE, 1] f32

    # Combined selector: [type one-hot | stereo one-hot | arom | conj | 0-pad]
    col = jax.lax.broadcasted_iota(jnp.int32, (te, k_pad), 1)
    c_flags = num_type + num_stereo
    sel = ((col == t_idx).astype(jnp.float32)
           + (col == (s_idx + num_type)).astype(jnp.float32)
           + jnp.where(col == c_flags, arom, 0.0)
           + jnp.where(col == c_flags + 1, conj, 0.0))   # [TE, K_pad]

    # One fused MXU matmul emits the full (padded) output row per edge.
    out_ref[...] = jnp.dot(sel, table_ref[...],
                           preferred_element_type=jnp.float32)


def edge_embedding(type_, stereo, aromatic, conjugated,
                   type_table, stereo_table, *, tile_e=4096):
    """JAX wrapper around the Pallas kernel.

    type_, stereo          : int indices, shape [E]
    aromatic, conjugated   : shape [E] (bool / int / float)
    type_table             : [num_type, D]   float
    stereo_table           : [num_stereo, D] float
    returns                : [E, 2*D + 2] float32
    """
    E = type_.shape[0]
    num_type, D = type_table.shape
    num_stereo = stereo_table.shape[0]
    out_dim = 2 * D + 2

    # ---- fused block-diagonal table (built once, stays resident in VMEM) ----
    K = num_type + num_stereo + 2
    K_pad = _round_up(K, 8)
    OUT_pad = _round_up(out_dim, 128)

    table = jnp.zeros((K_pad, OUT_pad), jnp.float32)
    table = table.at[:num_type, :D].set(type_table.astype(jnp.float32))
    table = table.at[num_type:num_type + num_stereo, D:2 * D].set(
        stereo_table.astype(jnp.float32))
    table = table.at[num_type + num_stereo, 2 * D].set(1.0)          # aromatic
    table = table.at[num_type + num_stereo + 1, 2 * D + 1].set(1.0)  # conjugated

    # ---- pack per-edge scalars into one [E_pad, 4] f32 array (1 DMA stream) ----
    feats = jnp.stack(
        [type_.astype(jnp.float32),
         stereo.astype(jnp.float32),
         aromatic.astype(jnp.float32),
         conjugated.astype(jnp.float32)], axis=1)                     # [E, 4]

    TE = min(tile_e, _round_up(E, 8))        # row tile, multiple of 8
    E_pad = _round_up(E, TE)
    if E_pad != E:
        feats = jnp.pad(feats, ((0, E_pad - E), (0, 0)))
    grid = (E_pad // TE,)

    kernel = functools.partial(_edge_embedding_kernel,
                               num_type=num_type, num_stereo=num_stereo)

    out_padded = pl.pallas_call(
        kernel,
        out_shape=jax.ShapeDtypeStruct((E_pad, OUT_pad), jnp.float32),
        grid=grid,
        in_specs=[
            pl.BlockSpec((TE, 4), lambda i: (i, 0)),          # per-edge scalars
            pl.BlockSpec((K_pad, OUT_pad), lambda i: (0, 0)),  # resident table
        ],
        out_specs=pl.BlockSpec((TE, OUT_pad), lambda i: (i, 0)),
        compiler_params=pltpu.CompilerParams(
            dimension_semantics=("parallel",)),
    )(feats, table)

    # Strip row padding and lane padding.
    return out_padded[:E, :out_dim]


if __name__ == "__main__":
    # Small, deterministic example shapes.
    E = 16            # number of edges
    num_type = 5
    num_stereo = 6
    embedding_dim = 8

    key = jax.random.PRNGKey(0)
    k_t, k_s, k_ti, k_si, k_a, k_c = jax.random.split(key, 6)

    # nn.Embedding default init ~ N(0, 1).
    type_table = jax.random.normal(k_t, (num_type, embedding_dim), jnp.float32)
    stereo_table = jax.random.normal(k_s, (num_stereo, embedding_dim), jnp.float32)

    type_ = jax.random.randint(k_ti, (E,), 0, num_type, jnp.int32)
    stereo = jax.random.randint(k_si, (E,), 0, num_stereo, jnp.int32)
    aromatic = jax.random.bernoulli(k_a, 0.5, (E,)).astype(jnp.float32)
    conjugated = jax.random.bernoulli(k_c, 0.5, (E,)).astype(jnp.float32)

    out = edge_embedding(type_, stereo, aromatic, conjugated,
                         type_table, stereo_table)
    out = jax.block_until_ready(out)

    # Pure-JAX reference (mirrors the PyTorch forward).
    ref = jnp.concatenate(
        [type_table[type_],
         stereo_table[stereo],
         jnp.stack([aromatic, conjugated], axis=1).astype(jnp.float32)],
        axis=1)

    assert out.shape == (E, 2 * embedding_dim + 2), out.shape
    assert out.dtype == jnp.float32
    assert jnp.allclose(out, ref, atol=1e-6), "mismatch vs reference"
    print("KERNEL_OK")
</pallas_src>

<mosaic_0001>
module attributes {stable_mosaic.version = 11 : i64} {
  func.func @_edge_embedding_kernel(%arg0: i32, %arg1: memref<16x4xf32, #tpu.memory_space<vmem>>, %arg2: memref<16x128xf32, #tpu.memory_space<vmem>>, %arg3: memref<16x128xf32, #tpu.memory_space<vmem>>) attributes {dimension_semantics = [#tpu.dimension_semantics<parallel>], iteration_bounds = array<i64: 1>, scalar_prefetch = 0 : i64, scratch_operands = 0 : i64, tpu.core_type = #tpu.core_type<tc>, window_params = [{transform_indices = @transform_0, window_bounds = array<i64: 16, 4>}, {pipeline_mode = #tpu.pipeline_mode<synchronous>, transform_indices = @transform_1, window_bounds = array<i64: 16, 128>}, {transform_indices = @transform_2, window_bounds = array<i64: 16, 128>}]} {
    %c0 = arith.constant 0 : index
    %c0_0 = arith.constant 0 : index
    %0 = vector.load %arg1[%c0, %c0_0] : memref<16x4xf32, #tpu.memory_space<vmem>>, vector<16x4xf32>
    %1 = vector.extract_strided_slice %0 {offsets = [0, 0], sizes = [16, 1], strides = [1, 1]} : vector<16x4xf32> to vector<16x1xf32>
    %2 = arith.fptosi %1 : vector<16x1xf32> to vector<16x1xi32>
    %3 = vector.extract_strided_slice %0 {offsets = [0, 1], sizes = [16, 1], strides = [1, 1]} : vector<16x4xf32> to vector<16x1xf32>
    %4 = arith.fptosi %3 : vector<16x1xf32> to vector<16x1xi32>
    %5 = vector.extract_strided_slice %0 {offsets = [0, 2], sizes = [16, 1], strides = [1, 1]} : vector<16x4xf32> to vector<16x1xf32>
    %6 = vector.extract_strided_slice %0 {offsets = [0, 3], sizes = [16, 1], strides = [1, 1]} : vector<16x4xf32> to vector<16x1xf32>
    %7 = tpu.iota {dimensions = array<i32: 1>} : vector<16x16xi32>
    %8 = vector.broadcast %2 : vector<16x1xi32> to vector<16x16xi32>
    %9 = arith.cmpi eq, %7, %8 : vector<16x16xi32>
    %10 = arith.extui %9 : vector<16x16xi1> to vector<16x16xi32>
    %11 = arith.sitofp %10 : vector<16x16xi32> to vector<16x16xf32>
    %c5_i32 = arith.constant 5 : i32
    %12 = vector.broadcast %c5_i32 : i32 to vector<16x1xi32>
    %13 = arith.addi %4, %12 : vector<16x1xi32>
    %14 = vector.broadcast %13 : vector<16x1xi32> to vector<16x16xi32>
    %15 = arith.cmpi eq, %7, %14 : vector<16x16xi32>
    %16 = arith.extui %15 : vector<16x16xi1> to vector<16x16xi32>
    %17 = arith.sitofp %16 : vector<16x16xi32> to vector<16x16xf32>
    %18 = arith.addf %11, %17 : vector<16x16xf32>
    %c11_i32 = arith.constant 11 : i32
    %19 = vector.broadcast %c11_i32 : i32 to vector<16x16xi32>
    %20 = arith.cmpi eq, %7, %19 : vector<16x16xi32>
    %cst = arith.constant 0.000000e+00 : f32
    %21 = vector.shape_cast %5 : vector<16x1xf32> to vector<16x1xf32>
    %22 = vector.broadcast %21 : vector<16x1xf32> to vector<16x16xf32>
    %23 = vector.broadcast %cst : f32 to vector<16x16xf32>
    %24 = arith.select %20, %22, %23 : vector<16x16xi1>, vector<16x16xf32>
    %25 = arith.addf %18, %24 : vector<16x16xf32>
    %c12_i32 = arith.constant 12 : i32
    %26 = vector.broadcast %c12_i32 : i32 to vector<16x16xi32>
    %27 = arith.cmpi eq, %7, %26 : vector<16x16xi32>
    %cst_1 = arith.constant 0.000000e+00 : f32
    %28 = vector.shape_cast %6 : vector<16x1xf32> to vector<16x1xf32>
    %29 = vector.broadcast %28 : vector<16x1xf32> to vector<16x16xf32>
    %30 = vector.broadcast %cst_1 : f32 to vector<16x16xf32>
    %31 = arith.select %27, %29, %30 : vector<16x16xi1>, vector<16x16xf32>
    %32 = arith.addf %25, %31 : vector<16x16xf32>
    %c0_2 = arith.constant 0 : index
    %c0_3 = arith.constant 0 : index
    %33 = vector.load %arg2[%c0_2, %c0_3] : memref<16x128xf32, #tpu.memory_space<vmem>>, vector<16x128xf32>
    %cst_4 = arith.constant dense<0.000000e+00> : vector<16x128xf32>
    %34 = tpu.matmul %32, %33, %cst_4 {dimension_numbers = #tpu.dot_dimension_numbers<[1], [0], [0], [1], [0, 0, 1, 1], [], []>} : vector<16x16xf32>, vector<16x128xf32>, vector<16x128xf32> -> vector<16x128xf32>
    %c0_5 = arith.constant 0 : index
    %c0_6 = arith.constant 0 : index
    %35 = vector.load %arg3[%c0_5, %c0_6] : memref<16x128xf32, #tpu.memory_space<vmem>>, vector<16x128xf32>
    tpu.vector_store %arg3[%c0_5, %c0_6], %34 {strides = array<i32>} : memref<16x128xf32, #tpu.memory_space<vmem>>, vector<16x128xf32>,
    return
  }
  func.func @transform_0(%arg0: i32) -> (i32, i32) {
    %c0_i32 = arith.constant 0 : i32
    %c0_i32_0 = arith.constant 0 : i32
    return %arg0, %c0_i32 : i32, i32
  }
  func.func @transform_1(%arg0: i32) -> (i32, i32) {
    %c0_i32 = arith.constant 0 : i32
    %c0_i32_0 = arith.constant 0 : i32
    %c0_i32_1 = arith.constant 0 : i32
    return %c0_i32, %c0_i32_0 : i32, i32
  }
  func.func @transform_2(%arg0: i32) -> (i32, i32) {
    %c0_i32 = arith.constant 0 : i32
    %c0_i32_0 = arith.constant 0 : i32
    return %arg0, %c0_i32 : i32, i32
  }
}

</mosaic_0001>

<llo_original>
// kernel: tpu_custom_call.1
$region0: #{tpu_custom_call.1}
  #allocation0 [shape = 'u32[]', space=smem, size = 0x4, offset = 0x4, fixed_abs, tag = 'smem constant byte address 0x4 - core index']
  #allocation1 [shape = 'u32[144,128]{1,0:T(1,128)}', space=vmem, size = 0x12000, scoped, tag = 'internal scratch']
  %s0 = inlined_call_operand.vmem [shape: f32[16,4], index: 0, kind: input, shape index: {}]
  %s1 = inlined_call_operand.vmem [shape: f32[16,128], index: 1, kind: input, shape index: {}]
  %s2 = inlined_call_operand.hbm [shape: f32[16,128], index: 2, kind: output, shape index: {}]
  %s3 = sld [smem:[#allocation0]]
  $region18: #{tpu_custom_call.1} parent=0
    _
  %s5 = ssub.s32 1, %s3
  %s6 = scalar_select 0, %s5, %s3
  $region1: #{tpu_custom_call.1} parent=0
    #allocation2 [shape = 'u8[8192]{0}', space=vmem, size = 0x2000, scoped, tag = 'output window, operand 0, single buffered']
    #allocation3 [shape = 's32[1]{0}', space=sflag, size = 0x4, scoped, tag = 'scoped memory for tpu_custom_call.1']
    %7 = vsyncpa [#allocation3], 0
    // Predicated region
    $region2: #{tpu_custom_call.1} parent=1 // pred_check
      _
    $region3: #{tpu_custom_call.1} parent=1 // pred_check_branch
      %9 = sbr.rel (0) target = $region5
    $region4: #{tpu_custom_call.1} parent=1 // pred_region
      _
    $region5: #{tpu_custom_call.1} parent=1 // pred_fallthru
      _
    // Predicated region
    $region6: #{tpu_custom_call.1} parent=1 // pred_check
      _
    $region7: #{tpu_custom_call.1} parent=1 // pred_check_branch
      %11 = sbr.rel (0) target = $region9
    $region8: #{tpu_custom_call.1} parent=1 // pred_region
      _
    $region9: #{tpu_custom_call.1} parent=1 // pred_fallthru
      _
    %v12 = vld [vmem:[%s0] sm:$0xff]
    %v13 = vld [vmem:[%s0 + $0x8] sm:$0xff]
    %v14 = vcvt.f32.s32.to.zero.pseudo %v12
    %v15 = vcvt.f32.s32.to.zero.pseudo %v13
    %v16 = vlaneseq
    %v17 = vand.u32 %v16, 127
    %18 = vset.pattern.permute.xlu0 0
    %19 = vperm.xlu0 %18, %v14
    %v20 = vpop.permute.xlu0 %19
    %21 = vset.pattern.permute.xlu0 0
    %22 = vperm.xlu0 %21, %v15
    %v23 = vpop.permute.xlu0 %22
    %vm24 = vcmp.eq.s32.totalorder %v17, %v20
    %vm25 = vcmp.eq.s32.totalorder %v17, %v23
    %v26 = vsel %vm24, 1, 0
    %v27 = vsel %vm25, 1, 0
    %v28 = vcvt.s32.f32 %v26
    %v29 = vcvt.s32.f32 %v27
    %v30 = vadd.s32 %v14, 5
    %v31 = vadd.s32 %v15, 5
    %32 = vset.pattern.permute.xlu0 1
    %33 = vperm.xlu0 %32, %v30
    %v34 = vpop.permute.xlu0 %33
    %35 = vset.pattern.permute.xlu0 1
    %36 = vperm.xlu0 %35, %v31
    %v37 = vpop.permute.xlu0 %36
    %vm38 = vcmp.eq.s32.totalorder %v17, %v34
    %vm39 = vcmp.eq.s32.totalorder %v17, %v37
    %v40 = vsel %vm38, 1, 0
    %v41 = vsel %vm39, 1, 0
    %v42 = vcvt.s32.f32 %v40
    %v43 = vcvt.s32.f32 %v41
    %v44 = vadd.f32 %v28, %v42
    %v45 = vadd.f32 %v29, %v43
    %vm46 = vcmp.eq.s32.totalorder %v17, 11
    %48 = vset.pattern.permute.xlu0 2
    %49 = vperm.xlu0 %48, %v12
    %v50 = vpop.permute.xlu0 %49
    %53 = vset.pattern.permute.xlu0 2
    %54 = vperm.xlu0 %53, %v13
    %v55 = vpop.permute.xlu0 %54
    %v57 = vsel %vm46, %v50, 0.0
    %v58 = vsel %vm46, %v55, 0.0
    %v59 = vadd.f32 %v44, %v57
    %v60 = vadd.f32 %v45, %v58
    %vm61 = vcmp.eq.s32.totalorder %v17, 12
    %62 = vset.pattern.permute.xlu0 3
    %63 = vperm.xlu0 %62, %v12
    %v64 = vpop.permute.xlu0 %63
    %66 = vset.pattern.permute.xlu0 3
    %67 = vperm.xlu0 %66, %v13
    %v68 = vpop.permute.xlu0 %67
    %v70 = vsel %vm61, %v64, 0.0
    %v71 = vsel %vm61, %v68, 0.0
    %v72 = vadd.f32 %v59, %v70
    %v73 = vadd.f32 %v60, %v71
    %v74 = vld [vmem:[%s1] sm:$0xff]
    %v75 = vld [vmem:[%s1 + $0x8] sm:$0xff]
    %vm76 = vcmask 130048
    %v78 = vsel %vm76, %v72, 0
    %v81 = vsel %vm76, %v73, 0
    %83 = vmatprep.subr.mxu0 0.0
    %84 = vmatpush1.msra.mxu0 %v74
    %85 = vmatprep.subr.mxu0 0.0
    %86 = vmatpush1.msra.mxu0 %v75
    %87 = vmatprep.subr.mxu0 0.0
    %88 = vmatpush1.msra.mxu0 0.0
    %89 = vmatprep.subr.mxu0 0.0
    %90 = vmatpush1.msra.mxu0 0.0
    %91 = vmatprep.subr.mxu0 0.0
    %92 = vmatpush1.msra.mxu0 0.0
    %93 = vmatprep.subr.mxu0 0.0
    %94 = vmatpush1.msra.mxu0 0.0
    %95 = vmatprep.subr.mxu0 0.0
    %96 = vmatpush1.msra.mxu0 0.0
    %97 = vmatprep.subr.mxu0 0.0
    %98 = vmatpush1.msra.mxu0 0.0
    %99 = vmatprep.subr.mxu0 0.0
    %100 = vmatpush1.msra.mxu0 0.0
    %101 = vmatprep.subr.mxu0 0.0
    %102 = vmatpush1.msra.mxu0 0.0
    %103 = vmatprep.subr.mxu0 0.0
    %104 = vmatpush1.msra.mxu0 0.0
    %105 = vmatprep.subr.mxu0 0.0
    %106 = vmatpush1.msra.mxu0 0.0
    %107 = vmatprep.subr.mxu0 0.0
    %108 = vmatpush1.msra.mxu0 0.0
    %109 = vmatprep.subr.mxu0 0.0
    %110 = vmatpush1.msra.mxu0 0.0
    %111 = vmatprep.subr.mxu0 0.0
    %112 = vmatpush1.msra.mxu0 0.0
    %113 = vmatprep.subr.mxu0 0.0
    %114 = vmatpush1.msra.mxu0 0.0
    %115 = vmatprep.subr.mxu0 0.0
    %116 = vmatpush1.msra.mxu0 0.0
    %117 = vmatprep.subr.mxu0 0.0
    %118 = vmatpush1.msra.mxu0 0.0
    %119 = vmatprep.subr.mxu0 0.0
    %120 = vmatpush1.msra.mxu0 0.0
    %121 = vmatprep.subr.mxu0 0.0
    %122 = vmatpush1.msra.mxu0 0.0
    %123 = vmatprep.subr.mxu0 0.0
    %124 = vmatpush1.msra.mxu0 0.0
    %125 = vmatprep.subr.mxu0 0.0
    %126 = vmatpush1.msra.mxu0 0.0
    %127 = vmatprep.subr.mxu0 0.0
    %128 = vmatpush1.msra.mxu0 0.0
    %129 = vmatprep.subr.mxu0 0.0
    %130 = vmatpush1.msra.mxu0 0.0
    %131 = vmatprep.subr.mxu0 0.0
    %132 = vmatpush1.msra.mxu0 0.0
    %133 = vmatprep.subr.mxu0 0.0
    %134 = vmatpush1.msra.mxu0 0.0
    %135 = vmatprep.subr.mxu0 0.0
    %136 = vmatpush1.msra.mxu0 0.0
    %137 = vmatprep.subr.mxu0 0.0
    %138 = vmatpush1.msra.mxu0 0.0
    %139 = vmatprep.subr.mxu0 0.0
    %140 = vmatpush1.msra.mxu0 0.0
    %141 = vmatprep.subr.mxu0 0.0
    %142 = vmatpush1.msra.mxu0 0.0
    %143 = vmatprep.subr.mxu0 0.0
    %144 = vmatpush1.msra.mxu0 0.0
    %145 = vmatprep.subr.mxu0 0.0
    %146 = vmatpush1.msra.mxu0 0.0
    %147 = vmatprep.mubr.f32.mxu0 0.0
    %148 = vmatmul.mubr.f32.gmra.mrb[0].mxu0 %v78
    %v149 = vpop.f32.mrb[0].mxu0
    %v150 = vadd.f32 0.0, %v149
    %v151 = vpop.f32.mrb[0].mxu0
    %152 = vmatprep.mubr.f32.mxu0 0.0
    %153 = vmatmul.mubr.f32.gmra.mrb[0].mxu0 %v81
    %v154 = vpop.f32.mrb[0].mxu0
    %v155 = vadd.f32 0.0, %v154
    %v156 = vpop.f32.mrb[0].mxu0
    %157 = vdwg.mxu0
    %158 = vst [vmem:[#allocation2] sm:$0xff] %v150
    %159 = vst [vmem:[#allocation2 + $0x8] sm:$0xff] %v155
    // Predicated region
    $region10: #{tpu_custom_call.1} parent=1 // pred_check
      _
    $region11: #{tpu_custom_call.1} parent=1 // pred_check_branch
      %161 = sbr.rel (0) target = $region13
    $region12: #{tpu_custom_call.1} parent=1 // pred_region
      %s163 = ssub.s32 256, 256
      %164 = vsyncadd [#allocation3], %s163
      %s165 = sshll.u32 [#allocation2], 4
      %s166 = int_to_ptr.vmem [resolvable:$true] %s165
      %171 = dma.vmem_to_hbm [thread:$0]  %s166, 256, %s2, [#allocation3], 128, 128, 8
    $region13: #{tpu_custom_call.1} parent=1 // pred_fallthru
      _
    // Predicated region
    $region14: #{tpu_custom_call.1} parent=1 // pred_check
      _
    $region15: #{tpu_custom_call.1} parent=1 // pred_check_branch
      %173 = sbr.rel (0) target = $region17
    $region16: #{tpu_custom_call.1} parent=1 // pred_region
      %174 = dma.done [#allocation3], 256
    $region17: #{tpu_custom_call.1} parent=1 // pred_fallthru
      _
    %175 = vsyncpa [#allocation3], 1

</llo_original>
